<compile_context>
chip_gen: v6e
topology: v6e:2x2x1
jax: 0.10.0
libtpu: 0.0.40
codegen_flags: <defaults>
</compile_context>

<pallas_src>
import math
import functools

import jax
import jax.numpy as jnp
from jax import lax
from jax.experimental import pallas as pl
from jax.experimental.pallas import tpu as pltpu


# ------------------------------------------------------------------ helpers

def _layernorm(x, gamma, beta, eps=1e-5):
    # x: (..., D) f32; gamma/beta: (1, D) f32  -- matches torch.nn.LayerNorm(embed_dim)
    mean = jnp.mean(x, axis=-1, keepdims=True)
    var = jnp.mean((x - mean) ** 2, axis=-1, keepdims=True)
    return (x - mean) * lax.rsqrt(var + eps) * gamma + beta


def _round_up(x, m):
    return ((x + m - 1) // m) * m


def _vmem_capacity():
    try:
        return int(pltpu.get_tpu_info().vmem_capacity_bytes)
    except Exception:
        return 64 << 20                      # conservative (v7x per-core VMEM)


_BUFFERED_OK = None


def _buffered_supported():
    """Probe once whether pipeline_mode=pl.Buffered(1) is accepted by this runtime."""
    global _BUFFERED_OK
    if _BUFFERED_OK is None:
        try:
            def _k(x_ref, o_ref):
                o_ref[...] = x_ref[...] + 1.0
            spec = pl.BlockSpec((8, 128), lambda i: (0, 0), pipeline_mode=pl.Buffered(1))
            r = pl.pallas_call(
                _k, out_shape=jax.ShapeDtypeStruct((8, 128), jnp.float32),
                grid=(2,), in_specs=[spec],
                out_specs=pl.BlockSpec((8, 128), lambda i: (0, 0)),
            )(jnp.zeros((8, 128), jnp.float32))
            jax.block_until_ready(r)
            _BUFFERED_OK = True
        except Exception:
            _BUFFERED_OK = False
    return _BUFFERED_OK


def _const_spec(shape):
    """BlockSpec for a grid-invariant operand; single-buffered when supported (halves its
    VMEM footprint -- the weights are the biggest VMEM item at real D)."""
    zeros = (0,) * len(shape)
    imap = lambda *_: zeros
    if _buffered_supported():
        return pl.BlockSpec(shape, imap, pipeline_mode=pl.Buffered(1))
    return pl.BlockSpec(shape, imap)


def _compiler_params(semantics, vmem_bytes):
    # per-generation scoped-VMEM limit: footprint + slack, capped by the chip's capacity
    cap = _vmem_capacity()
    limit = max(min(int(vmem_bytes) + (16 << 20), int(cap * 0.9)), 32 << 20)
    return pltpu.CompilerParams(dimension_semantics=semantics, vmem_limit_bytes=limit)


# ------------------------------------------------------------------ kernels

def kv_proj_kernel(x_ref, wk_ref, bk_ref, wv_ref, bv_ref, k_ref, v_ref, *, num_heads):
    """K/V projections for one (batch, seq-tile); outputs head-split (1, H, TS, dh).
    The head split is done once here (O(S*D)) so the attention hot loop gets head-batched
    (H, TK, dh) tiles with no per-step relayout."""
    D = x_ref.shape[2]
    dh = D // num_heads
    x = x_ref[0]                                            # (TS, D) bf16 residual stream

    def proj(w_ref, b_ref, o_ref):
        y = jnp.dot(x, w_ref[...], preferred_element_type=jnp.float32) + b_ref[...]
        yb = y.astype(o_ref.dtype)
        for h in range(num_heads):                          # static split; negligible vs attn
            o_ref[0, h] = yb[:, h * dh:(h + 1) * dh]

    proj(wk_ref, bk_ref, k_ref)
    proj(wv_ref, bv_ref, v_ref)


def attn_ffn_kernel(x_ref, wq_ref, bq_ref, k_ref, v_ref,
                    wo_ref, bo_ref, g1_ref, be1_ref,
                    w1_ref, b1_ref, w2_ref, b2_ref, g2_ref, be2_ref,
                    out_ref, q_scr, m_scr, l_scr, acc_scr,
                    *, num_heads, causal, ff_chunk):
    """One (batch, Q-tile, K-tile) flash-attention step; the epilogue (out-proj + residual/LN
    + FFN + residual/LN) runs on the last K tile.

    TODO(synk): MultiHeadSelfAttention was not defined in the source file; assuming standard
    separate Q/K/V/O linear projections with an additive causal mask; dropout = identity."""
    qi = pl.program_id(1)
    ki = pl.program_id(2)
    nk = pl.num_programs(2)

    tq, D = x_ref.shape[1], x_ref.shape[2]
    tk, dh = k_ref.shape[2], k_ref.shape[3]
    scale = 1.0 / math.sqrt(dh)

    # ---- per-Q-tile init: fused Q projection (softmax scale folded in) + m/l/acc reset
    @pl.when(ki == 0)
    def _init():
        q = jnp.dot(x_ref[0], wq_ref[...], preferred_element_type=jnp.float32) + bq_ref[...]
        qb = (q * scale).astype(jnp.bfloat16)               # (TQ, D)
        for h in range(num_heads):
            q_scr[h] = qb[:, h * dh:(h + 1) * dh]           # head-split scratch (H, TQ, dh)
        m_scr[...] = jnp.full(m_scr.shape, -1e30, m_scr.dtype)
        l_scr[...] = jnp.zeros(l_scr.shape, l_scr.dtype)
        acc_scr[...] = jnp.zeros(acc_scr.shape, acc_scr.dtype)

    # ---- online-softmax update for this K tile (skipped for fully-future tiles)
    def _compute():
        kh = k_ref[0]                                       # (H, TK, dh) bf16
        vh = v_ref[0]
        s = jnp.einsum('hqd,hkd->hqk', q_scr[...], kh,
                       preferred_element_type=jnp.float32)  # (H, TQ, TK) f32
        if causal:
            q_pos = qi * tq + lax.broadcasted_iota(jnp.int32, (tq, tk), 0)
            k_pos = ki * tk + lax.broadcasted_iota(jnp.int32, (tq, tk), 1)
            s = jnp.where((k_pos <= q_pos)[None, :, :], s, -1e30)
        m_prev = m_scr[...]
        m_new = jnp.maximum(m_prev, jnp.max(s, axis=-1, keepdims=True))
        alpha = jnp.exp(m_prev - m_new)
        p = jnp.exp(s - m_new)
        l_scr[...] = alpha * l_scr[...] + jnp.sum(p, axis=-1, keepdims=True)
        acc_scr[...] = alpha * acc_scr[...] + jnp.einsum(
            'hqk,hkd->hqd', p.astype(jnp.bfloat16), vh,
            preferred_element_type=jnp.float32)
        m_scr[...] = m_new

    if causal:
        pl.when(ki * tk < (qi + 1) * tq)(_compute)          # skip fully-masked K tiles
    else:
        _compute()

    # ---- epilogue on the last K tile
    @pl.when(ki == nk - 1)
    def _finalize():
        ctx = acc_scr[...] * pl.reciprocal(l_scr[...], approx=True)      # (H, TQ, dh) f32
        ctx2 = jnp.concatenate([ctx[h] for h in range(num_heads)],
                               axis=-1).astype(jnp.bfloat16)             # (TQ, D)
        attn = jnp.dot(ctx2, wo_ref[...], preferred_element_type=jnp.float32) + bo_ref[...]

        x = x_ref[0].astype(jnp.float32)
        h1 = _layernorm(x + attn, g1_ref[...], be1_ref[...])
        h1b = h1.astype(jnp.bfloat16)

        dff = w1_ref.shape[1]
        if dff <= ff_chunk:                                 # small FFN: single pass
            ff = jnp.maximum(jnp.dot(h1b, w1_ref[...], preferred_element_type=jnp.float32)
                             + b1_ref[...], 0.0)
            ff = jnp.dot(ff.astype(jnp.bfloat16), w2_ref[...],
                         preferred_element_type=jnp.float32) + b2_ref[...]
        else:                                               # chunk Dff -> bounded live temp
            def body(c, acc):
                off = pl.multiple_of(c * ff_chunk, ff_chunk)
                h = jnp.dot(h1b, w1_ref[:, pl.ds(off, ff_chunk)],
                            preferred_element_type=jnp.float32) + b1_ref[:, pl.ds(off, ff_chunk)]
                h = jnp.maximum(h, 0.0).astype(jnp.bfloat16)
                return acc + jnp.dot(h, w2_ref[pl.ds(off, ff_chunk), :],
                                     preferred_element_type=jnp.float32)
            ff = lax.fori_loop(0, dff // ff_chunk, body,
                               jnp.zeros((tq, D), jnp.float32)) + b2_ref[...]

        out_ref[0] = _layernorm(h1 + ff, g2_ref[...], be2_ref[...]).astype(out_ref.dtype)


def final_kernel(x_ref, g_ref, b_ref, wout_ref, bout_ref, out_ref, ln_scr):
    """Final LayerNorm (hoisted: computed once per (batch, seq-tile) at the first vocab tile)
    + one lane-dense vocab tile of the output projection."""
    @pl.when(pl.program_id(2) == 0)
    def _():
        ln_scr[...] = _layernorm(x_ref[0].astype(jnp.float32),
                                 g_ref[...], b_ref[...]).astype(jnp.bfloat16)
    logits = jnp.dot(ln_scr[...], wout_ref[...],
                     preferred_element_type=jnp.float32) + bout_ref[...]
    out_ref[0] = logits.astype(out_ref.dtype)


# ------------------------------------------------------------------ wrappers

def kv_proj_call(x, lp, num_heads, ts):
    B, S, D = x.shape
    dh = D // num_heads
    ns = S // ts

    kv_shape = jax.ShapeDtypeStruct((B, num_heads, S, dh), jnp.bfloat16)
    o_spec = pl.BlockSpec((1, num_heads, ts, dh), lambda b, i: (b, 0, i, 0))

    wbuf = 1 if _buffered_supported() else 2
    vmem = (2 * ts * D * 2 + wbuf * (2 * D * D * 2 + 2 * D * 4)
            + 2 * 2 * ts * D * 2 + 4 * ts * D * 4)

    return pl.pallas_call(
        functools.partial(kv_proj_kernel, num_heads=num_heads),
        out_shape=(kv_shape, kv_shape),
        grid=(B, ns),
        in_specs=[pl.BlockSpec((1, ts, D), lambda b, i: (b, i, 0)),
                  _const_spec((D, D)), _const_spec((1, D)),
                  _const_spec((D, D)), _const_spec((1, D))],
        out_specs=(o_spec, o_spec),
        compiler_params=_compiler_params(("parallel", "parallel"), vmem),
    )(x, lp["wk"], lp["bk"], lp["wv"], lp["bv"])


def attn_ffn_call(x, k, v, lp, num_heads, tq, tk, causal, ff_chunk):
    B, S, D = x.shape
    dh = D // num_heads
    Dff = lp["w1"].shape[1]
    nq, nk = S // tq, S // tk

    x_spec = pl.BlockSpec((1, tq, D), lambda b, i, j: (b, i, 0))
    if causal:
        # Clamp the K/V tile index to the last tile this Q tile can attend to: fully-future
        # tiles re-request the previous block index, so Pallas skips their DMA entirely.
        kv_imap = lambda b, i, j: (b, 0, jnp.minimum(j, ((i + 1) * tq - 1) // tk), 0)
    else:
        kv_imap = lambda b, i, j: (b, 0, j, 0)
    kv_spec = pl.BlockSpec((1, num_heads, tk, dh), kv_imap)

    in_specs = [
        x_spec,
        _const_spec((D, D)), _const_spec((1, D)),           # wq, bq
        kv_spec, kv_spec,                                   # k, v (double-buffered -> overlap)
        _const_spec((D, D)), _const_spec((1, D)),           # wo, bo
        _const_spec((1, D)), _const_spec((1, D)),           # g1, be1
        _const_spec((D, Dff)), _const_spec((1, Dff)),       # w1, b1
        _const_spec((Dff, D)), _const_spec((1, D)),         # w2, b2
        _const_spec((1, D)), _const_spec((1, D)),           # g2, be2
    ]

    wbuf = 1 if _buffered_supported() else 2
    vmem = (2 * tq * D * 2 + 2 * tq * D * 2                                # x + out blocks
            + 2 * 2 * num_heads * tk * dh * 2                              # k/v tiles x2 bufs
            + wbuf * (2 * D * D * 2 + 2 * D * Dff * 2 + (6 * D + Dff) * 4)  # weights/biases/LN
            + num_heads * tq * dh * 6 + 2 * num_heads * tq * 4             # scratch
            + 2 * num_heads * tq * tk * 4                                  # s, p f32
            + 2 * tq * max(ff_chunk, D) * 4 + 2 * tq * D * 4)              # FFN/LN temporaries

    return pl.pallas_call(
        functools.partial(attn_ffn_kernel, num_heads=num_heads,
                          causal=causal, ff_chunk=ff_chunk),
        out_shape=jax.ShapeDtypeStruct((B, S, D), jnp.bfloat16),           # bf16 residual stream
        grid=(B, nq, nk),
        in_specs=in_specs,
        out_specs=pl.BlockSpec((1, tq, D), lambda b, i, j: (b, i, 0)),
        scratch_shapes=[pltpu.VMEM((num_heads, tq, dh), jnp.bfloat16),     # q (pre-scaled)
                        pltpu.VMEM((num_heads, tq, 1), jnp.float32),       # m
                        pltpu.VMEM((num_heads, tq, 1), jnp.float32),       # l
                        pltpu.VMEM((num_heads, tq, dh), jnp.float32)],     # acc
        compiler_params=_compiler_params(("parallel", "parallel", "arbitrary"), vmem),
    )(x, lp["wq"], lp["bq"], k, v,
      lp["wo"], lp["bo"], lp["g1"], lp["be1"],
      lp["w1"], lp["b1"], lp["w2"], lp["b2"], lp["g2"], lp["be2"])


def final_call(x, g, b, wout, bout, ts, tv):
    B, S, D = x.shape
    V = wout.shape[1]
    Vp = _round_up(V, tv)
    if Vp != V:                                             # pad vocab -> lane-dense tiles
        wout = jnp.pad(wout, ((0, 0), (0, Vp - V)))
        bout = jnp.pad(bout, ((0, 0), (0, Vp - V)))
    ns, nv = S // ts, Vp // tv

    vmem = (2 * ts * D * 2 + 2 * (D * tv * 2 + tv * 4)
            + 2 * ts * tv * 4 + ts * D * 2 + ts * D * 4 + 2 * D * 4)

    out = pl.pallas_call(
        final_kernel,
        out_shape=jax.ShapeDtypeStruct((B, S, Vp), jnp.float32),
        grid=(B, ns, nv),
        in_specs=[pl.BlockSpec((1, ts, D), lambda b, i, j: (b, i, 0)),
                  _const_spec((1, D)), _const_spec((1, D)),
                  pl.BlockSpec((D, tv), lambda b, i, j: (0, j)),
                  pl.BlockSpec((1, tv), lambda b, i, j: (0, j))],
        out_specs=pl.BlockSpec((1, ts, tv), lambda b, i, j: (b, i, j)),
        scratch_shapes=[pltpu.VMEM((ts, D), jnp.bfloat16)],                # hoisted LN result
        compiler_params=_compiler_params(("parallel", "parallel", "arbitrary"), vmem),
    )(x, g, b, wout, bout)
    return out[..., :V] if Vp != V else out


def positional_encoding(S, D):
    # assumes even D (same as the torch PositionalEncoding buffer construction)
    position = jnp.arange(S, dtype=jnp.float32)[:, None]
    div_term = jnp.exp(jnp.arange(0, D, 2, dtype=jnp.float32) * (-math.log(10000.0) / D))
    pe = jnp.zeros((S, D), jnp.float32)
    pe = pe.at[:, 0::2].set(jnp.sin(position * div_term))
    pe = pe.at[:, 1::2].set(jnp.cos(position * div_term))
    return pe


def _pick_seq_tile(S):
    for t in (256, 128):
        if S % t == 0 and S > t:
            return t
    return S


def decoder_forward(tokens, params, num_heads, causal=True, tq=None, tk=None):
    B, S = tokens.shape
    D = params["embed"].shape[1]
    V = params["wout"].shape[1]
    Dff = params["layers"][0]["w1"].shape[1]

    # TODO(synk): embedding gather + positional-encoding add kept as JAX glue
    # (data-dependent gather has no cheap BlockSpec expression at this scale).
    x = (params["embed"][tokens] + positional_encoding(S, D)[None, :, :]).astype(jnp.bfloat16)

    tq = tq or _pick_seq_tile(S)
    tk = tk or tq
    ff_chunk = 512 if (Dff > 512 and Dff % 512 == 0) else Dff

    for lp in params["layers"]:
        k, v = kv_proj_call(x, lp, num_heads, tq)
        x = attn_ffn_call(x, k, v, lp, num_heads, tq, tk, causal, ff_chunk)

    # vocab tile: lane-dense multiple of 128; smaller on 64 MiB-VMEM parts (v7x)
    tv_max = 1024 if _vmem_capacity() <= (64 << 20) else 2048
    tv = tv_max if V >= tv_max else _round_up(V, 128)
    return final_call(x, params["ln_g"], params["ln_b"],
                      params["wout"], params["bout"], ts=tq, tv=tv)


# ------------------------------------------------------------------ pure-JAX reference

def decoder_reference(tokens, params, num_heads, causal=True):
    """Reference mirroring the kernel's precision choices (bf16 matmul inputs, f32 accum,
    bf16 residual stream) for a tolerance check."""
    B, S = tokens.shape
    D = params["embed"].shape[1]
    H, dh = num_heads, params["embed"].shape[1] // num_heads
    x = (params["embed"][tokens] + positional_encoding(S, D)[None, :, :]).astype(jnp.bfloat16)

    def lin(h, w, b):
        return jnp.dot(h.astype(jnp.bfloat16), w, preferred_element_type=jnp.float32) + b

    mask = jnp.tril(jnp.ones((S, S), bool)) if causal else None
    for lp in params["layers"]:
        q = ((lin(x, lp["wq"], lp["bq"]) / math.sqrt(dh)).astype(jnp.bfloat16)
             .reshape(B, S, H, dh).transpose(0, 2, 1, 3))
        k = lin(x, lp["wk"], lp["bk"]).astype(jnp.bfloat16).reshape(B, S, H, dh).transpose(0, 2, 1, 3)
        v = lin(x, lp["wv"], lp["bv"]).astype(jnp.bfloat16).reshape(B, S, H, dh).transpose(0, 2, 1, 3)
        s = jnp.einsum('bhqd,bhkd->bhqk', q, k, preferred_element_type=jnp.float32)
        if causal:
            s = jnp.where(mask[None, None], s, -1e30)
        p = jnp.exp(s - jnp.max(s, axis=-1, keepdims=True))
        ctx = jnp.einsum('bhqk,bhkd->bhqd', p.astype(jnp.bfloat16), v,
                         preferred_element_type=jnp.float32)
        ctx = ctx / jnp.sum(p, axis=-1, keepdims=True)
        ctx = ctx.transpose(0, 2, 1, 3).reshape(B, S, D).astype(jnp.bfloat16)
        attn = jnp.dot(ctx, lp["wo"], preferred_element_type=jnp.float32) + lp["bo"]
        h1 = _layernorm(x.astype(jnp.float32) + attn, lp["g1"], lp["be1"])
        ff = jnp.maximum(lin(h1, lp["w1"], lp["b1"]), 0.0)
        ff = lin(ff, lp["w2"], lp["b2"])
        x = _layernorm(h1 + ff, lp["g2"], lp["be2"]).astype(jnp.bfloat16)
    h = _layernorm(x.astype(jnp.float32), params["ln_g"], params["ln_b"])
    return lin(h, params["wout"], params["bout"])


# ------------------------------------------------------------------ params

def _linear_init(key, fan_in, fan_out):
    kw, kb = jax.random.split(key)
    bound = 1.0 / math.sqrt(fan_in)
    w = jax.random.uniform(kw, (fan_in, fan_out), jnp.float32, -bound, bound)
    b = jax.random.uniform(kb, (1, fan_out), jnp.float32, -bound, bound)
    # bf16 weights feed the MXU directly (f32 accumulation in-kernel); biases stay f32
    return w.astype(jnp.bfloat16), b


def init_params(key, vocab, D, num_layers, expansion=4):
    keys = jax.random.split(key, 2 + 6 * num_layers)
    ki = iter(range(len(keys)))
    params = {"embed": jax.random.normal(keys[next(ki)], (vocab, D), jnp.float32)}
    layers = []
    Dff = D * expansion
    for _ in range(num_layers):
        lp = {}
        lp["wq"], lp["bq"] = _linear_init(keys[next(ki)], D, D)
        lp["wk"], lp["bk"] = _linear_init(keys[next(ki)], D, D)
        lp["wv"], lp["bv"] = _linear_init(keys[next(ki)], D, D)
        lp["wo"], lp["bo"] = _linear_init(keys[next(ki)], D, D)
        lp["w1"], lp["b1"] = _linear_init(keys[next(ki)], D, Dff)
        lp["w2"], lp["b2"] = _linear_init(keys[next(ki)], Dff, D)
        lp["g1"], lp["be1"] = jnp.ones((1, D), jnp.float32), jnp.zeros((1, D), jnp.float32)
        lp["g2"], lp["be2"] = jnp.ones((1, D), jnp.float32), jnp.zeros((1, D), jnp.float32)
        layers.append(lp)
    params["layers"] = layers
    params["ln_g"] = jnp.ones((1, D), jnp.float32)
    params["ln_b"] = jnp.zeros((1, D), jnp.float32)
    params["wout"], params["bout"] = _linear_init(keys[next(ki)], D, vocab)
    return params


# ------------------------------------------------------------------ main

if __name__ == "__main__":
    vocab_size, embed_dim, num_heads, num_layers = 64, 32, 4, 2
    batch, seq = 2, 16

    key = jax.random.PRNGKey(0)
    pkey, tkey = jax.random.split(key)
    params = init_params(pkey, vocab_size, embed_dim, num_layers)
    tokens = jax.random.randint(tkey, (batch, seq), 0, vocab_size)

    # small seq tiles so the toy run exercises the flash K-tile loop + causal tile skipping
    logits = decoder_forward(tokens, params, num_heads=num_heads, causal=True, tq=8, tk=8)
    jax.block_until_ready(logits)
    assert logits.shape == (batch, seq, vocab_size)

    ref = decoder_reference(tokens, params, num_heads=num_heads, causal=True)
    assert bool(jnp.all(jnp.isfinite(logits)))
    assert bool(jnp.allclose(logits, ref, atol=1e-1, rtol=1e-1)), \
        float(jnp.max(jnp.abs(logits - ref)))
    print("KERNEL_OK")
</pallas_src>

<mosaic_0001>
module attributes {stable_mosaic.version = 11 : i64} {
  func.func @_k(%arg0: i32, %arg1: memref<8x128xf32, #tpu.memory_space<vmem>>, %arg2: memref<8x128xf32, #tpu.memory_space<vmem>>) attributes {dimension_semantics = [#tpu.dimension_semantics<arbitrary>], iteration_bounds = array<i64: 2>, scalar_prefetch = 0 : i64, scratch_operands = 0 : i64, tpu.core_type = #tpu.core_type<tc>, window_params = [{pipeline_mode = #tpu.pipeline_mode<synchronous>, transform_indices = @transform_0, window_bounds = array<i64: 8, 128>}, {pipeline_mode = #tpu.pipeline_mode<synchronous>, transform_indices = @transform_1, window_bounds = array<i64: 8, 128>}]} {
    %c0 = arith.constant 0 : index
    %c0_0 = arith.constant 0 : index
    %0 = vector.load %arg1[%c0, %c0_0] : memref<8x128xf32, #tpu.memory_space<vmem>>, vector<8x128xf32>
    %cst = arith.constant 1.000000e+00 : f32
    %1 = vector.broadcast %cst : f32 to vector<8x128xf32>
    %2 = arith.addf %0, %1 : vector<8x128xf32>
    %c0_1 = arith.constant 0 : index
    %c0_2 = arith.constant 0 : index
    %3 = vector.load %arg2[%c0_1, %c0_2] : memref<8x128xf32, #tpu.memory_space<vmem>>, vector<8x128xf32>
    tpu.vector_store %arg2[%c0_1, %c0_2], %2 {strides = array<i32>} : memref<8x128xf32, #tpu.memory_space<vmem>>, vector<8x128xf32>,
    return
  }
  func.func @transform_0(%arg0: i32) -> (i32, i32) {
    %c0_i32 = arith.constant 0 : i32
    %c0_i32_0 = arith.constant 0 : i32
    %c0_i32_1 = arith.constant 0 : i32
    return %c0_i32, %c0_i32_0 : i32, i32
  }
  func.func @transform_1(%arg0: i32) -> (i32, i32) {
    %c0_i32 = arith.constant 0 : i32
    %c0_i32_0 = arith.constant 0 : i32
    %c0_i32_1 = arith.constant 0 : i32
    return %c0_i32, %c0_i32_0 : i32, i32
  }
}

module attributes {stable_mosaic.version = 11 : i64} {
  func.func @kv_proj_kernel(%arg0: i32, %arg1: i32, %arg2: memref<1x8x32xbf16, #tpu.memory_space<vmem>>, %arg3: memref<32x32xbf16, #tpu.memory_space<vmem>>, %arg4: memref<1x32xf32, #tpu.memory_space<vmem>>, %arg5: memref<32x32xbf16, #tpu.memory_space<vmem>>, %arg6: memref<1x32xf32, #tpu.memory_space<vmem>>, %arg7: memref<1x4x8x8xbf16, #tpu.memory_space<vmem>>, %arg8: memref<1x4x8x8xbf16, #tpu.memory_space<vmem>>) attributes {dimension_semantics = [#tpu.dimension_semantics<parallel>, #tpu.dimension_semantics<parallel>], iteration_bounds = array<i64: 2, 2>, scalar_prefetch = 0 : i64, scratch_operands = 0 : i64, tpu.core_type = #tpu.core_type<tc>, window_params = [{transform_indices = @transform_0, window_bounds = array<i64: 1, 8, 32>}, {pipeline_mode = #tpu.pipeline_mode<synchronous>, transform_indices = @transform_1, window_bounds = array<i64: 32, 32>}, {pipeline_mode = #tpu.pipeline_mode<synchronous>, transform_indices = @transform_2, window_bounds = array<i64: 1, 32>}, {pipeline_mode = #tpu.pipeline_mode<synchronous>, transform_indices = @transform_3, window_bounds = array<i64: 32, 32>}, {pipeline_mode = #tpu.pipeline_mode<synchronous>, transform_indices = @transform_4, window_bounds = array<i64: 1, 32>}, {transform_indices = @transform_5, window_bounds = array<i64: 1, 4, 8, 8>}, {transform_indices = @transform_6, window_bounds = array<i64: 1, 4, 8, 8>}]} {
    %c0 = arith.constant 0 : index
    %c0_0 = arith.constant 0 : index
    %c0_1 = arith.constant 0 : index
    %0 = vector.load %arg2[%c0, %c0_0, %c0_1] : memref<1x8x32xbf16, #tpu.memory_space<vmem>>, vector<1x8x32xbf16>
    %1 = vector.shape_cast %0 : vector<1x8x32xbf16> to vector<8x32xbf16>
    %c0_2 = arith.constant 0 : index
    %c0_3 = arith.constant 0 : index
    %2 = vector.load %arg3[%c0_2, %c0_3] : memref<32x32xbf16, #tpu.memory_space<vmem>>, vector<32x32xbf16>
    %cst = arith.constant dense<0.000000e+00> : vector<8x32xf32>
    %3 = tpu.matmul %1, %2, %cst {dimension_numbers = #tpu.dot_dimension_numbers<[1], [0], [0], [1], [0, 0, 1, 1], [], []>} : vector<8x32xbf16>, vector<32x32xbf16>, vector<8x32xf32> -> vector<8x32xf32>
    %c0_4 = arith.constant 0 : index
    %c0_5 = arith.constant 0 : index
    %4 = vector.load %arg4[%c0_4, %c0_5] : memref<1x32xf32, #tpu.memory_space<vmem>>, vector<1x32xf32>
    %5 = vector.broadcast %4 : vector<1x32xf32> to vector<8x32xf32>
    %6 = arith.addf %3, %5 : vector<8x32xf32>
    %7 = arith.truncf %6 : vector<8x32xf32> to vector<8x32xbf16>
    %8 = vector.extract_strided_slice %7 {offsets = [0, 0], sizes = [8, 8], strides = [1, 1]} : vector<8x32xbf16> to vector<8x8xbf16>
    %c0_6 = arith.constant 0 : index
    %c0_7 = arith.constant 0 : index
    %c0_8 = arith.constant 0 : index
    %c0_9 = arith.constant 0 : index
    %9 = vector.load %arg7[%c0_6, %c0_7, %c0_8, %c0_9] : memref<1x4x8x8xbf16, #tpu.memory_space<vmem>>, vector<1x1x8x8xbf16>
    %10 = vector.shape_cast %9 : vector<1x1x8x8xbf16> to vector<8x8xbf16>
    %11 = vector.shape_cast %8 : vector<8x8xbf16> to vector<1x1x8x8xbf16>
    tpu.vector_store %arg7[%c0_6, %c0_7, %c0_8, %c0_9], %11 {strides = array<i32>} : memref<1x4x8x8xbf16, #tpu.memory_space<vmem>>, vector<1x1x8x8xbf16>,
    %12 = vector.extract_strided_slice %7 {offsets = [0, 8], sizes = [8, 8], strides = [1, 1]} : vector<8x32xbf16> to vector<8x8xbf16>
    %c0_10 = arith.constant 0 : index
    %c1 = arith.constant 1 : index
    %c0_11 = arith.constant 0 : index
    %c0_12 = arith.constant 0 : index
    %13 = vector.load %arg7[%c0_10, %c1, %c0_11, %c0_12] : memref<1x4x8x8xbf16, #tpu.memory_space<vmem>>, vector<1x1x8x8xbf16>
    %14 = vector.shape_cast %13 : vector<1x1x8x8xbf16> to vector<8x8xbf16>
    %15 = vector.shape_cast %12 : vector<8x8xbf16> to vector<1x1x8x8xbf16>
    tpu.vector_store %arg7[%c0_10, %c1, %c0_11, %c0_12], %15 {strides = array<i32>} : memref<1x4x8x8xbf16, #tpu.memory_space<vmem>>, vector<1x1x8x8xbf16>,
    %16 = vector.extract_strided_slice %7 {offsets = [0, 16], sizes = [8, 8], strides = [1, 1]} : vector<8x32xbf16> to vector<8x8xbf16>
    %c0_13 = arith.constant 0 : index
    %c2 = arith.constant 2 : index
    %c0_14 = arith.constant 0 : index
    %c0_15 = arith.constant 0 : index
    %17 = vector.load %arg7[%c0_13, %c2, %c0_14, %c0_15] : memref<1x4x8x8xbf16, #tpu.memory_space<vmem>>, vector<1x1x8x8xbf16>
    %18 = vector.shape_cast %17 : vector<1x1x8x8xbf16> to vector<8x8xbf16>
    %19 = vector.shape_cast %16 : vector<8x8xbf16> to vector<1x1x8x8xbf16>
    tpu.vector_store %arg7[%c0_13, %c2, %c0_14, %c0_15], %19 {strides = array<i32>} : memref<1x4x8x8xbf16, #tpu.memory_space<vmem>>, vector<1x1x8x8xbf16>,
    %20 = vector.extract_strided_slice %7 {offsets = [0, 24], sizes = [8, 8], strides = [1, 1]} : vector<8x32xbf16> to vector<8x8xbf16>
    %c0_16 = arith.constant 0 : index
    %c3 = arith.constant 3 : index
    %c0_17 = arith.constant 0 : index
    %c0_18 = arith.constant 0 : index
    %21 = vector.load %arg7[%c0_16, %c3, %c0_17, %c0_18] : memref<1x4x8x8xbf16, #tpu.memory_space<vmem>>, vector<1x1x8x8xbf16>
    %22 = vector.shape_cast %21 : vector<1x1x8x8xbf16> to vector<8x8xbf16>
    %23 = vector.shape_cast %20 : vector<8x8xbf16> to vector<1x1x8x8xbf16>
    tpu.vector_store %arg7[%c0_16, %c3, %c0_17, %c0_18], %23 {strides = array<i32>} : memref<1x4x8x8xbf16, #tpu.memory_space<vmem>>, vector<1x1x8x8xbf16>,
    %c0_19 = arith.constant 0 : index
    %c0_20 = arith.constant 0 : index
    %24 = vector.load %arg5[%c0_19, %c0_20] : memref<32x32xbf16, #tpu.memory_space<vmem>>, vector<32x32xbf16>
    %cst_21 = arith.constant dense<0.000000e+00> : vector<8x32xf32>
    %25 = tpu.matmul %1, %24, %cst_21 {dimension_numbers = #tpu.dot_dimension_numbers<[1], [0], [0], [1], [0, 0, 1, 1], [], []>} : vector<8x32xbf16>, vector<32x32xbf16>, vector<8x32xf32> -> vector<8x32xf32>
    %c0_22 = arith.constant 0 : index
    %c0_23 = arith.constant 0 : index
    %26 = vector.load %arg6[%c0_22, %c0_23] : memref<1x32xf32, #tpu.memory_space<vmem>>, vector<1x32xf32>
    %27 = vector.broadcast %26 : vector<1x32xf32> to vector<8x32xf32>
    %28 = arith.addf %25, %27 : vector<8x32xf32>
    %29 = arith.truncf %28 : vector<8x32xf32> to vector<8x32xbf16>
    %30 = vector.extract_strided_slice %29 {offsets = [0, 0], sizes = [8, 8], strides = [1, 1]} : vector<8x32xbf16> to vector<8x8xbf16>
    %c0_24 = arith.constant 0 : index
    %c0_25 = arith.constant 0 : index
    %c0_26 = arith.constant 0 : index
    %c0_27 = arith.constant 0 : index
    %31 = vector.load %arg8[%c0_24, %c0_25, %c0_26, %c0_27] : memref<1x4x8x8xbf16, #tpu.memory_space<vmem>>, vector<1x1x8x8xbf16>
    %32 = vector.shape_cast %31 : vector<1x1x8x8xbf16> to vector<8x8xbf16>
    %33 = vector.shape_cast %30 : vector<8x8xbf16> to vector<1x1x8x8xbf16>
    tpu.vector_store %arg8[%c0_24, %c0_25, %c0_26, %c0_27], %33 {strides = array<i32>} : memref<1x4x8x8xbf16, #tpu.memory_space<vmem>>, vector<1x1x8x8xbf16>,
    %34 = vector.extract_strided_slice %29 {offsets = [0, 8], sizes = [8, 8], strides = [1, 1]} : vector<8x32xbf16> to vector<8x8xbf16>
    %c0_28 = arith.constant 0 : index
    %c1_29 = arith.constant 1 : index
    %c0_30 = arith.constant 0 : index
    %c0_31 = arith.constant 0 : index
    %35 = vector.load %arg8[%c0_28, %c1_29, %c0_30, %c0_31] : memref<1x4x8x8xbf16, #tpu.memory_space<vmem>>, vector<1x1x8x8xbf16>
    %36 = vector.shape_cast %35 : vector<1x1x8x8xbf16> to vector<8x8xbf16>
    %37 = vector.shape_cast %34 : vector<8x8xbf16> to vector<1x1x8x8xbf16>
    tpu.vector_store %arg8[%c0_28, %c1_29, %c0_30, %c0_31], %37 {strides = array<i32>} : memref<1x4x8x8xbf16, #tpu.memory_space<vmem>>, vector<1x1x8x8xbf16>,
    %38 = vector.extract_strided_slice %29 {offsets = [0, 16], sizes = [8, 8], strides = [1, 1]} : vector<8x32xbf16> to vector<8x8xbf16>
    %c0_32 = arith.constant 0 : index
    %c2_33 = arith.constant 2 : index
    %c0_34 = arith.constant 0 : index
    %c0_35 = arith.constant 0 : index
    %39 = vector.load %arg8[%c0_32, %c2_33, %c0_34, %c0_35] : memref<1x4x8x8xbf16, #tpu.memory_space<vmem>>, vector<1x1x8x8xbf16>
    %40 = vector.shape_cast %39 : vector<1x1x8x8xbf16> to vector<8x8xbf16>
    %41 = vector.shape_cast %38 : vector<8x8xbf16> to vector<1x1x8x8xbf16>
    tpu.vector_store %arg8[%c0_32, %c2_33, %c0_34, %c0_35], %41 {strides = array<i32>} : memref<1x4x8x8xbf16, #tpu.memory_space<vmem>>, vector<1x1x8x8xbf16>,
    %42 = vector.extract_strided_slice %29 {offsets = [0, 24], sizes = [8, 8], strides = [1, 1]} : vector<8x32xbf16> to vector<8x8xbf16>
    %c0_36 = arith.constant 0 : index
    %c3_37 = arith.constant 3 : index
    %c0_38 = arith.constant 0 : index
    %c0_39 = arith.constant 0 : index
    %43 = vector.load %arg8[%c0_36, %c3_37, %c0_38, %c0_39] : memref<1x4x8x8xbf16, #tpu.memory_space<vmem>>, vector<1x1x8x8xbf16>
    %44 = vector.shape_cast %43 : vector<1x1x8x8xbf16> to vector<8x8xbf16>
    %45 = vector.shape_cast %42 : vector<8x8xbf16> to vector<1x1x8x8xbf16>
    tpu.vector_store %arg8[%c0_36, %c3_37, %c0_38, %c0_39], %45 {strides = array<i32>} : memref<1x4x8x8xbf16, #tpu.memory_space<vmem>>, vector<1x1x8x8xbf16>,
    return
  }
  func.func @transform_0(%arg0: i32, %arg1: i32) -> (i32, i32, i32) {
    %c0_i32 = arith.constant 0 : i32
    %c0_i32_0 = arith.constant 0 : i32
    return %arg0, %arg1, %c0_i32 : i32, i32, i32
  }
  func.func @transform_1(%arg0: i32, %arg1: i32) -> (i32, i32) {
    %c0_i32 = arith.constant 0 : i32
    %c0_i32_0 = arith.constant 0 : i32
    %c0_i32_1 = arith.constant 0 : i32
    return %c0_i32, %c0_i32_0 : i32, i32
  }
  func.func @transform_2(%arg0: i32, %arg1: i32) -> (i32, i32) {
    %c0_i32 = arith.constant 0 : i32
    %c0_i32_0 = arith.constant 0 : i32
    %c0_i32_1 = arith.constant 0 : i32
    return %c0_i32, %c0_i32_0 : i32, i32
  }
  func.func @transform_3(%arg0: i32, %arg1: i32) -> (i32, i32) {
    %c0_i32 = arith.constant 0 : i32
    %c0_i32_0 = arith.constant 0 : i32
    %c0_i32_1 = arith.constant 0 : i32
    return %c0_i32, %c0_i32_0 : i32, i32
  }
  func.func @transform_4(%arg0: i32, %arg1: i32) -> (i32, i32) {
    %c0_i32 = arith.constant 0 : i32
    %c0_i32_0 = arith.constant 0 : i32
    %c0_i32_1 = arith.constant 0 : i32
    return %c0_i32, %c0_i32_0 : i32, i32
  }
  func.func @transform_5(%arg0: i32, %arg1: i32) -> (i32, i32, i32, i32) {
    %c0_i32 = arith.constant 0 : i32
    %c0_i32_0 = arith.constant 0 : i32
    %c0_i32_1 = arith.constant 0 : i32
    return %arg0, %c0_i32, %arg1, %c0_i32_0 : i32, i32, i32, i32
  }
  func.func @transform_6(%arg0: i32, %arg1: i32) -> (i32, i32, i32, i32) {
    %c0_i32 = arith.constant 0 : i32
    %c0_i32_0 = arith.constant 0 : i32
    %c0_i32_1 = arith.constant 0 : i32
    return %arg0, %c0_i32, %arg1, %c0_i32_0 : i32, i32, i32, i32
  }
}

</mosaic_0001>

<llo_original>
// kernel: tpu_custom_call.1
$region0: #{tpu_custom_call.1}
  #allocation0 [shape = 'u32[]', space=smem, size = 0x4, offset = 0x4, fixed_abs, tag = 'smem constant byte address 0x4 - core index']
  #allocation1 [shape = 'u32[144,128]{1,0:T(1,128)}', space=vmem, size = 0x12000, scoped, tag = 'internal scratch']
  %s0 = inlined_call_operand.hbm [shape: f32[8,128], index: 0, kind: input, shape index: {}]
  %s1 = inlined_call_operand.hbm [shape: f32[8,128], index: 1, kind: output, shape index: {}]
  %s2 = sld [smem:[#allocation0]]
  $region41: #{tpu_custom_call.1} parent=0
    _
  %s4 = ssub.s32 1, %s2
  %s5 = scalar_select 0, %s4, %s2
  $region1: #{tpu_custom_call.1} parent=0
    #allocation2 [shape = 'u8[4096]{0}', space=vmem, size = 0x1000, scoped, tag = 'input window, operand 0, single buffered']
    #allocation3 [shape = 's32[2]{0}', space=sflag, size = 0x8, scoped, tag = 'scoped memory for tpu_custom_call.1']
    #allocation4 [shape = 's32[2]{0}', space=sflag, size = 0x8, scoped, tag = 'scoped memory for tpu_custom_call.1']
    #allocation5 [shape = 'u8[4096]{0}', space=vmem, size = 0x1000, scoped, tag = 'output window, operand 0, single buffered']
    %6 = vsyncpa [#allocation3], 0
    %7 = vsyncpa [#allocation4], 0
    loop: start=0, step=1, limit=4
    $region2: #{tpu_custom_call.1} parent=1 // loop_pre_header
      _
    $region3: #{tpu_custom_call.1} parent=1 // loop_header
      %s9 = sphi 0, %s13
      %p10 = scmp.ge.s32.totalorder %s9, 4
      %s17 = sphi 0, %s17
      %s19 = sphi 0, %s17
      %s20 = sphi 0, %s19
      %s34 = sphi 0, %s20
      %s38 = sphi 0, %s38
      %s40 = sphi 0, %s38
      %s41 = sphi 0, %s40
      %s55 = sphi 0, %s41
    $region4: #{tpu_custom_call.1} parent=1 // loop_header_branch
      %12 = sbr.rel (%p10) target = $region8
    $region5: #{tpu_custom_call.1} parent=1 // loop_body
      %s14 = ssub.s32 %s9, 1
      %s15 = ssub.s32 %s9, 2
      %s16 = sadd.s32 %s9, 1
      %s18 = sadd.s32 %s17, 1
      %p21 = scmp.eq.s32.totalorder %s9, 1
      %p22 = scmp.ne.s32.totalorder %s17, %s19
      %p23 = scmp.eq.s32.totalorder %s9, 0
      %p24 = por %p22, %p23
      %p25 = scmp.ne.s32.totalorder %s17, %s19
      %p26 = scmp.eq.s32.totalorder %s14, 1
      %p27 = por %p25, %p26
      %p28 = scmp.ne.s32.totalorder %s19, %s20
      %p29 = scmp.eq.s32.totalorder %s14, 0
      %p30 = por %p28, %p29
      %p31 = scmp.ne.s32.totalorder %s19, %s20
      %p32 = scmp.eq.s32.totalorder %s15, 1
      %p33 = por %p31, %p32
      %p35 = scmp.ne.s32.totalorder %s20, %s34
      %p36 = scmp.eq.s32.totalorder %s15, 0
      %p37 = por %p35, %p36
      %s39 = sadd.s32 %s38, 1
      %p42 = scmp.eq.s32.totalorder %s9, 1
      %p43 = scmp.ne.s32.totalorder %s38, %s40
      %p44 = scmp.eq.s32.totalorder %s9, 0
      %p45 = por %p43, %p44
      %p46 = scmp.ne.s32.totalorder %s38, %s40
      %p47 = scmp.eq.s32.totalorder %s14, 1
      %p48 = por %p46, %p47
      %p49 = scmp.ne.s32.totalorder %s40, %s41
      %p50 = scmp.eq.s32.totalorder %s14, 0
      %p51 = por %p49, %p50
      %p52 = scmp.ne.s32.totalorder %s40, %s41
      %p53 = scmp.eq.s32.totalorder %s15, 1
      %p54 = por %p52, %p53
      %p56 = scmp.ne.s32.totalorder %s41, %s55
      %p57 = scmp.eq.s32.totalorder %s15, 0
      %p58 = por %p56, %p57
      %p59 = scmp.le.s32.totalorder 1, %s9
      %p60 = scmp.lt.s32.totalorder %s9, 3
      %p61 = pnand %p59, %p60
      %p62 = pneg %p61
      // Predicated region
      $region9: #{tpu_custom_call.1} parent=5 // pred_check
        _
      $region10: #{tpu_custom_call.1} parent=5 // pred_check_branch
        %64 = sbr.rel (%p61) target = $region12
      $region11: #{tpu_custom_call.1} parent=5 // pred_region
        %s65 = ssub.s32 %s9, 1
        // Predicated region
        $region13: #{tpu_custom_call.1} parent=11 // pred_check
          %p66 = pneg %p30
        $region14: #{tpu_custom_call.1} parent=11 // pred_check_branch
          %68 = sbr.rel (%p66) target = $region16
        $region15: #{tpu_custom_call.1} parent=11 // pred_region
          %s70 = ssub.s32 128, 128
          %71 = vsyncadd [#allocation3], %s70
          %s73 = sshll.u32 [#allocation2], 4
          %s74 = int_to_ptr.vmem [resolvable:$true] %s73
          %76 = dma.hbm_to_vmem [thread:$0]  %s0, 128, %s74, [#allocation3]
        $region16: #{tpu_custom_call.1} parent=11 // pred_fallthru
          _
      $region12: #{tpu_custom_call.1} parent=5 // pred_fallthru
        _
      %p77 = scmp.lt.s32.totalorder %s9, 2
      // Predicated region
      $region17: #{tpu_custom_call.1} parent=5 // pred_check
        %p78 = pneg %p77
      $region18: #{tpu_custom_call.1} parent=5 // pred_check_branch
        %80 = sbr.rel (%p78) target = $region20
      $region19: #{tpu_custom_call.1} parent=5 // pred_region
        _
      $region20: #{tpu_custom_call.1} parent=5 // pred_fallthru
        _
      %p81 = scmp.le.s32.totalorder 1, %s9
      %p82 = scmp.lt.s32.totalorder %s9, 3
      %p83 = pnand %p81, %p82
      %p84 = pneg %p83
      // Predicated region
      $region21: #{tpu_custom_call.1} parent=5 // pred_check
        _
      $region22: #{tpu_custom_call.1} parent=5 // pred_check_branch
        %86 = sbr.rel (%p83) target = $region24
      $region23: #{tpu_custom_call.1} parent=5 // pred_region
        %s87 = ssub.s32 %s9, 1
        // Predicated region
        $region25: #{tpu_custom_call.1} parent=23 // pred_check
          %p88 = pneg %p30
        $region26: #{tpu_custom_call.1} parent=23 // pred_check_branch
          %90 = sbr.rel (%p88) target = $region28
        $region27: #{tpu_custom_call.1} parent=23 // pred_region
          %91 = dma.done [#allocation3], 128
        $region28: #{tpu_custom_call.1} parent=23 // pred_fallthru
          _
        %p92 = pneg %p30
        %p93 = pneg %p27
        %p94 = pneg %p51
        %p95 = pneg %p48
        %v96 = vld [vmem:[#allocation2] sm:$0xff]
        %v97 = vadd.f32 %v96, 1.0
        %98 = vst [vmem:[#allocation5] sm:$0xff] %v97
        // Predicated region
        $region29: #{tpu_custom_call.1} parent=23 // pred_check
          %p99 = pneg %p48
        $region30: #{tpu_custom_call.1} parent=23 // pred_check_branch
          %101 = sbr.rel (%p99) target = $region32
        $region31: #{tpu_custom_call.1} parent=23 // pred_region
          %s103 = ssub.s32 128, 128
          %104 = vsyncadd [#allocation4], %s103
          %s106 = sshll.u32 [#allocation5], 4
          %s107 = int_to_ptr.vmem [resolvable:$true] %s106
          %109 = dma.vmem_to_hbm [thread:$0]  %s107, 128, %s1, [#allocation4]
        $region32: #{tpu_custom_call.1} parent=23 // pred_fallthru
          _
        // Predicated region
        $region33: #{tpu_custom_call.1} parent=23 // pred_check
          %p110 = pneg %p48
        $region34: #{tpu_custom_call.1} parent=23 // pred_check_branch
          %112 = sbr.rel (%p110) target = $region36
        $region35: #{tpu_custom_call.1} parent=23 // pred_region
          %113 = dma.done [#allocation4], 128
        $region36: #{tpu_custom_call.1} parent=23 // pred_fallthru
          _
      $region24: #{tpu_custom_call.1} parent=5 // pred_fallthru
        _
      %p114 = scmp.le.s32.totalorder 2, %s9
      // Predicated region
      $region37: #{tpu_custom_call.1} parent=5 // pred_check
        %p115 = pneg %p114
      $region38: #{tpu_custom_call.1} parent=5 // pred_check_branch
        %117 = sbr.rel (%p115) target = $region40
      $region39: #{tpu_custom_call.1} parent=5 // pred_region
        %s118 = ssub.s32 %s9, 2
      $region40: #{tpu_custom_call.1} parent=5 // pred_fallthru
        _
    $region6: #{tpu_custom_call.1} parent=1 // loop_footer
      %s13 = sadd.s32 1, %s9
    $region7: #{tpu_custom_call.1} parent=1 // loop_footer_branch
      %8 = sbr.rel target = $region3
    $region8: #{tpu_custom_call.1} parent=1 // loop_exit
      _
    %119 = vsyncpa [#allocation3], 1
    %s120 = scalar_lea.sflag [#allocation3], 1
    %121 = vsyncpa %s120, 1
    %122 = vsyncpa [#allocation4], 1
    %s123 = scalar_lea.sflag [#allocation4], 1
    %124 = vsyncpa %s123, 1

// kernel: tpu_custom_call.1
$region0: #{tpu_custom_call.1}
  #allocation0 [shape = 'u32[]', space=smem, size = 0x4, offset = 0x4, fixed_abs, tag = 'smem constant byte address 0x4 - core index']
  #allocation1 [shape = 'u32[144,128]{1,0:T(1,128)}', space=vmem, size = 0x12000, scoped, tag = 'internal scratch']
  %s0 = inlined_call_operand.hbm [shape: bf16[2,16,32], index: 0, kind: input, shape index: {}]
  %s1 = inlined_call_operand.hbm [shape: bf16[32,32], index: 1, kind: input, shape index: {}]
  %s2 = inlined_call_operand.vmem [shape: f32[1,32], index: 2, kind: input, shape index: {}]
  %s3 = inlined_call_operand.hbm [shape: bf16[32,32], index: 3, kind: input, shape index: {}]
  %s4 = inlined_call_operand.vmem [shape: f32[1,32], index: 4, kind: input, shape index: {}]
  %s5 = inlined_call_operand.vmem [shape: bf16[2,4,16,8], index: 5, kind: output, shape index: {0}]
  %s6 = inlined_call_operand.vmem [shape: bf16[2,4,16,8], index: 6, kind: output, shape index: {1}]
  %7 = xla_tuple %s5, %s6
  %s8 = sld [smem:[#allocation0]]
  $region147: #{tpu_custom_call.1} parent=0
    _
  %s10 = ssub.s32 1, %s8
  %s11 = scalar_select 0, %s10, %s8
  $region1: #{tpu_custom_call.1} parent=0
    #allocation2 [shape = 'u8[4096]{0}', space=vmem, size = 0x1000, scoped, tag = 'input window, operand 0']
    #allocation3 [shape = 's32[2]{0}', space=sflag, size = 0x8, scoped, tag = 'scoped memory for tpu_custom_call.1']
    #allocation4 [shape = 'u8[8192]{0}', space=vmem, size = 0x2000, scoped, tag = 'input window, operand 1, single buffered']
    #allocation5 [shape = 's32[1]{0}', space=sflag, size = 0x4, scoped, tag = 'scoped memory for tpu_custom_call.1']
    #allocation6 [shape = 'u8[8192]{0}', space=vmem, size = 0x2000, scoped, tag = 'input window, operand 3, single buffered']
    #allocation7 [shape = 'u8[16384]{0}', space=vmem, size = 0x4000, scoped, tag = 'output window, operand 0']
    #allocation8 [shape = 'u8[16384]{0}', space=vmem, size = 0x4000, scoped, tag = 'output window, operand 1']
    %12 = vsyncpa [#allocation3], 0
    %s13 = scalar_lea.sflag [#allocation3], 1
    %14 = vsyncpa %s13, 0
    %15 = vsyncpa [#allocation5], 0
    loop: start=0, step=1, limit=6
    $region2: #{tpu_custom_call.1} parent=1 // loop_pre_header
      _
    $region3: #{tpu_custom_call.1} parent=1 // loop_header
      %s17 = sphi 0, %s21
      %p18 = scmp.ge.s32.totalorder %s17, 6
      %s24 = sphi 0, %s36
      %s25 = sphi 0, %s32
      %s26 = sphi 0, %s24
      %s27 = sphi 0, %s25
      %s28 = sphi 0, %s26
      %s29 = sphi 0, %s27
      %s41 = sphi 0, %s43
      %s44 = sphi 0, %s41
      %s45 = sphi 0, %s44
      %s61 = sphi 0, %s45
      %s65 = sphi 0, %s65
      %s67 = sphi 0, %s65
      %s68 = sphi 0, %s67
      %s82 = sphi 0, %s68
      %s86 = sphi 0, %s86
      %s88 = sphi 0, %s86
      %s89 = sphi 0, %s88
      %s103 = sphi 0, %s89
      %s107 = sphi 0, %s107
      %s109 = sphi 0, %s107
      %s110 = sphi 0, %s109
      %s124 = sphi 0, %s110
      %s128 = sphi 0, %s128
      %s130 = sphi 0, %s128
      %s131 = sphi 0, %s130
      %s145 = sphi 0, %s131
      %s153 = sphi 0, %s155
      %s156 = sphi 0, %s153
      %s157 = sphi 0, %s156
      %s173 = sphi 0, %s157
      %s181 = sphi 0, %s183
      %s184 = sphi 0, %s181
      %s185 = sphi 0, %s184
      %s201 = sphi 0, %s185
    $region4: #{tpu_custom_call.1} parent=1 // loop_header_branch
      %20 = sbr.rel (%p18) target = $region8
    $region5: #{tpu_custom_call.1} parent=1 // loop_body
      %s22 = ssub.s32 %s17, 1
      %s23 = ssub.s32 %s17, 2
      %s30 = sadd.s32 1, %s25
      %p31 = scmp.ge.s32.totalorder %s30, 2
      %s32 = scalar_select %p31, 0, %s30
      %s33 = sadd.s32 1, %s24
      %s34 = scalar_select %p31, %s33, %s24
      %p35 = scmp.ge.s32.totalorder %s34, 2
      %s36 = scalar_select %p35, 0, %s34
      %s37 = ssub.s32 %s24, %s36
      %s38 = ssub.s32 %s25, %s32
      %s39 = sor.u32 %s37, %s38
      %p40 = scmp.eq.s32.totalorder %s39, 0
      %s42 = sadd.s32 %s41, 1
      %s43 = scalar_select %p40, %s41, %s42
      %p46 = pneg %p40
      %p47 = scmp.eq.s32.totalorder %s17, 3
      %p48 = por %p46, %p47
      %p49 = scmp.ne.s32.totalorder %s41, %s44
      %p50 = scmp.eq.s32.totalorder %s17, 0
      %p51 = por %p49, %p50
      %p52 = scmp.ne.s32.totalorder %s41, %s44
      %p53 = scmp.eq.s32.totalorder %s22, 3
      %p54 = por %p52, %p53
      %p55 = scmp.ne.s32.totalorder %s44, %s45
      %p56 = scmp.eq.s32.totalorder %s22, 0
      %p57 = por %p55, %p56
      %p58 = scmp.ne.s32.totalorder %s44, %s45
      %p59 = scmp.eq.s32.totalorder %s23, 3
      %p60 = por %p58, %p59
      %p62 = scmp.ne.s32.totalorder %s45, %s61
      %p63 = scmp.eq.s32.totalorder %s23, 0
      %p64 = por %p62, %p63
      %s66 = sadd.s32 %s65, 1
      %p69 = scmp.eq.s32.totalorder %s17, 3
      %p70 = scmp.ne.s32.totalorder %s65, %s67
      %p71 = scmp.eq.s32.totalorder %s17, 0
      %p72 = por %p70, %p71
      %p73 = scmp.ne.s32.totalorder %s65, %s67
      %p74 = scmp.eq.s32.totalorder %s22, 3
      %p75 = por %p73, %p74
      %p76 = scmp.ne.s32.totalorder %s67, %s68
      %p77 = scmp.eq.s32.totalorder %s22, 0
      %p78 = por %p76, %p77
      %p79 = scmp.ne.s32.totalorder %s67, %s68
      %p80 = scmp.eq.s32.totalorder %s23, 3
      %p81 = por %p79, %p80
      %p83 = scmp.ne.s32.totalorder %s68, %s82
      %p84 = scmp.eq.s32.totalorder %s23, 0
      %p85 = por %p83, %p84
      %s87 = sadd.s32 %s86, 1
      %p90 = scmp.eq.s32.totalorder %s17, 3
      %p91 = scmp.ne.s32.totalorder %s86, %s88
      %p92 = scmp.eq.s32.totalorder %s17, 0
      %p93 = por %p91, %p92
      %p94 = scmp.ne.s32.totalorder %s86, %s88
      %p95 = scmp.eq.s32.totalorder %s22, 3
      %p96 = por %p94, %p95
      %p97 = scmp.ne.s32.totalorder %s88, %s89
      %p98 = scmp.eq.s32.totalorder %s22, 0
      %p99 = por %p97, %p98
      %p100 = scmp.ne.s32.totalorder %s88, %s89
      %p101 = scmp.eq.s32.totalorder %s23, 3
      %p102 = por %p100, %p101
      %p104 = scmp.ne.s32.totalorder %s89, %s103
      %p105 = scmp.eq.s32.totalorder %s23, 0
      %p106 = por %p104, %p105
      %s108 = sadd.s32 %s107, 1
      %p111 = scmp.eq.s32.totalorder %s17, 3
      %p112 = scmp.ne.s32.totalorder %s107, %s109
      %p113 = scmp.eq.s32.totalorder %s17, 0
      %p114 = por %p112, %p113
      %p115 = scmp.ne.s32.totalorder %s107, %s109
      %p116 = scmp.eq.s32.totalorder %s22, 3
      %p117 = por %p115, %p116
      %p118 = scmp.ne.s32.totalorder %s109, %s110
      %p119 = scmp.eq.s32.totalorder %s22, 0
      %p120 = por %p118, %p119
      %p121 = scmp.ne.s32.totalorder %s109, %s110
      %p122 = scmp.eq.s32.totalorder %s23, 3
      %p123 = por %p121, %p122
      %p125 = scmp.ne.s32.totalorder %s110, %s124
      %p126 = scmp.eq.s32.totalorder %s23, 0
      %p127 = por %p125, %p126
      %s129 = sadd.s32 %s128, 1
      %p132 = scmp.eq.s32.totalorder %s17, 3
      %p133 = scmp.ne.s32.totalorder %s128, %s130
      %p134 = scmp.eq.s32.totalorder %s17, 0
      %p135 = por %p133, %p134
      %p136 = scmp.ne.s32.totalorder %s128, %s130
      %p137 = scmp.eq.s32.totalorder %s22, 3
      %p138 = por %p136, %p137
      %p139 = scmp.ne.s32.totalorder %s130, %s131
      %p140 = scmp.eq.s32.totalorder %s22, 0
      %p141 = por %p139, %p140
      %p142 = scmp.ne.s32.totalorder %s130, %s131
      %p143 = scmp.eq.s32.totalorder %s23, 3
      %p144 = por %p142, %p143
      %p146 = scmp.ne.s32.totalorder %s131, %s145
      %p147 = scmp.eq.s32.totalorder %s23, 0
      %p148 = por %p146, %p147
      %s149 = ssub.s32 %s24, %s36
      %s150 = ssub.s32 %s25, %s32
      %s151 = sor.u32 %s149, %s150
      %p152 = scmp.eq.s32.totalorder %s151, 0
      %s154 = sadd.s32 %s153, 1
      %s155 = scalar_select %p152, %s153, %s154
      %p158 = pneg %p152
      %p159 = scmp.eq.s32.totalorder %s17, 3
      %p160 = por %p158, %p159
      %p161 = scmp.ne.s32.totalorder %s153, %s156
      %p162 = scmp.eq.s32.totalorder %s17, 0
      %p163 = por %p161, %p162
      %p164 = scmp.ne.s32.totalorder %s153, %s156
      %p165 = scmp.eq.s32.totalorder %s22, 3
      %p166 = por %p164, %p165
      %p167 = scmp.ne.s32.totalorder %s156, %s157
      %p168 = scmp.eq.s32.totalorder %s22, 0
      %p169 = por %p167, %p168
      %p170 = scmp.ne.s32.totalorder %s156, %s157
      %p171 = scmp.eq.s32.totalorder %s23, 3
      %p172 = por %p170, %p171
      %p174 = scmp.ne.s32.totalorder %s157, %s173
      %p175 = scmp.eq.s32.totalorder %s23, 0
      %p176 = por %p174, %p175
      %s177 = ssub.s32 %s24, %s36
      %s178 = ssub.s32 %s25, %s32
      %s179 = sor.u32 %s177, %s178
      %p180 = scmp.eq.s32.totalorder %s179, 0
      %s182 = sadd.s32 %s181, 1
      %s183 = scalar_select %p180, %s181, %s182
      %p186 = pneg %p180
      %p187 = scmp.eq.s32.totalorder %s17, 3
      %p188 = por %p186, %p187
      %p189 = scmp.ne.s32.totalorder %s181, %s184
      %p190 = scmp.eq.s32.totalorder %s17, 0
      %p191 = por %p189, %p190
      %p192 = scmp.ne.s32.totalorder %s181, %s184
      %p193 = scmp.eq.s32.totalorder %s22, 3
      %p194 = por %p192, %p193
      %p195 = scmp.ne.s32.totalorder %s184, %s185
      %p196 = scmp.eq.s32.totalorder %s22, 0
      %p197 = por %p195, %p196
      %p198 = scmp.ne.s32.totalorder %s184, %s185
      %p199 = scmp.eq.s32.totalorder %s23, 3
      %p200 = por %p198, %p199
      %p202 = scmp.ne.s32.totalorder %s185, %s201
      %p203 = scmp.eq.s32.totalorder %s23, 0
      %p204 = por %p202, %p203
      %p205 = scmp.le.s32.totalorder 1, %s17
      %p206 = scmp.lt.s32.totalorder %s17, 5
      %p207 = pnand %p205, %p206
      %p208 = pneg %p207
      // Predicated region
      $region9: #{tpu_custom_call.1} parent=5 // pred_check
        _
      $region10: #{tpu_custom_call.1} parent=5 // pred_check_branch
        %210 = sbr.rel (%p207) target = $region12
      $region11: #{tpu_custom_call.1} parent=5 // pred_region
        %s211 = ssub.s32 %s17, 1
        // Predicated region
        $region13: #{tpu_custom_call.1} parent=11 // pred_check
          %p212 = pneg %p78
        $region14: #{tpu_custom_call.1} parent=11 // pred_check_branch
          %214 = sbr.rel (%p212) target = $region16
        $region15: #{tpu_custom_call.1} parent=11 // pred_region
          %s216 = ssub.s32 256, 256
          %217 = vsyncadd [#allocation5], %s216
          %s218 = sshll.u32 [#allocation4], 4
          %s219 = int_to_ptr.vmem [resolvable:$true] %s218
          %224 = dma.hbm_to_vmem [thread:$0]  %s1, 256, %s219, [#allocation5], 64, 64, 4
        $region16: #{tpu_custom_call.1} parent=11 // pred_fallthru
          _
        // Predicated region
        $region17: #{tpu_custom_call.1} parent=11 // pred_check
          %p225 = pneg %p99
        $region18: #{tpu_custom_call.1} parent=11 // pred_check_branch
          %227 = sbr.rel (%p225) target = $region20
        $region19: #{tpu_custom_call.1} parent=11 // pred_region
          _
        $region20: #{tpu_custom_call.1} parent=11 // pred_fallthru
          _
        // Predicated region
        $region21: #{tpu_custom_call.1} parent=11 // pred_check
          %p228 = pneg %p120
        $region22: #{tpu_custom_call.1} parent=11 // pred_check_branch
          %230 = sbr.rel (%p228) target = $region24
        $region23: #{tpu_custom_call.1} parent=11 // pred_region
          %s232 = ssub.s32 256, 256
          %233 = vsyncadd [#allocation5], %s232
          %s234 = sshll.u32 [#allocation6], 4
          %s235 = int_to_ptr.vmem [resolvable:$true] %s234
          %240 = dma.hbm_to_vmem [thread:$0]  %s3, 256, %s235, [#allocation5], 64, 64, 4
        $region24: #{tpu_custom_call.1} parent=11 // pred_fallthru
          _
        // Predicated region
        $region25: #{tpu_custom_call.1} parent=11 // pred_check
          %p241 = pneg %p141
        $region26: #{tpu_custom_call.1} parent=11 // pred_check_branch
          %243 = sbr.rel (%p241) target = $region28
        $region27: #{tpu_custom_call.1} parent=11 // pred_region
          _
        $region28: #{tpu_custom_call.1} parent=11 // pred_fallthru
          _
      $region12: #{tpu_custom_call.1} parent=5 // pred_fallthru
        _
      %p244 = scmp.lt.s32.totalorder %s17, 4
      // Predicated region
      $region29: #{tpu_custom_call.1} parent=5 // pred_check
        %p245 = pneg %p244
      $region30: #{tpu_custom_call.1} parent=5 // pred_check_branch
        %247 = sbr.rel (%p245) target = $region32
      $region31: #{tpu_custom_call.1} parent=5 // pred_region
        // Predicated region
        $region33: #{tpu_custom_call.1} parent=31 // pred_check
          %p248 = pneg %p51
        $region34: #{tpu_custom_call.1} parent=31 // pred_check_branch
          %250 = sbr.rel (%p248) target = $region36
        $region35: #{tpu_custom_call.1} parent=31 // pred_region
          %s251 = sand.u32 %s41, 1
          %s252 = scalar_lea.sflag [#allocation3], %s251
          %s253 = sand.u32 %s41, 1
          %s254 = smul.addr %s253, 4
          %s255 = scalar_lea.vmem [#allocation2], %s254
          %s257 = ssub.s32 64, 64
          %258 = vsyncadd %s252, %s257
          %s259 = smul.addr %s24, 2
          %s260 = sadd.s32 %s25, %s259
          %s261 = smul.addr %s260, 64
          %s262 = scalar_lea.hbm %s0, %s261
          %s264 = sshll.u32 %s255, 4
          %s265 = int_to_ptr.vmem [resolvable:$true] %s264
          %267 = dma.hbm_to_vmem [thread:$0]  %s262, 64, %s265, %s252
        $region36: #{tpu_custom_call.1} parent=31 // pred_fallthru
          _
      $region32: #{tpu_custom_call.1} parent=5 // pred_fallthru
        _
      %p268 = scmp.le.s32.totalorder 1, %s17
      %p269 = scmp.lt.s32.totalorder %s17, 5
      %p270 = pnand %p268, %p269
      %p271 = pneg %p270
      // Predicated region
      $region37: #{tpu_custom_call.1} parent=5 // pred_check
        _
      $region38: #{tpu_custom_call.1} parent=5 // pred_check_branch
        %273 = sbr.rel (%p270) target = $region40
      $region39: #{tpu_custom_call.1} parent=5 // pred_region
        %s274 = ssub.s32 %s17, 1
        %s275 = sand.u32 %s44, 1
        %s276 = scalar_lea.sflag [#allocation3], %s275
        %s277 = sand.u32 %s44, 1
        %s278 = smul.addr %s277, 4
        %s279 = scalar_lea.vmem [#allocation2], %s278
        // Predicated region
        $region41: #{tpu_custom_call.1} parent=39 // pred_check
          %p280 = pneg %p57
        $region42: #{tpu_custom_call.1} parent=39 // pred_check_branch
          %282 = sbr.rel (%p280) target = $region44
        $region43: #{tpu_custom_call.1} parent=39 // pred_region
          %283 = dma.done %s276, 64
        $region44: #{tpu_custom_call.1} parent=39 // pred_fallthru
          _
        // Predicated region
        $region45: #{tpu_custom_call.1} parent=39 // pred_check
          %p284 = pneg %p78
        $region46: #{tpu_custom_call.1} parent=39 // pred_check_branch
          %286 = sbr.rel (%p284) target = $region48
        $region47: #{tpu_custom_call.1} parent=39 // pred_region
          %287 = dma.done [#allocation5], 256
        $region48: #{tpu_custom_call.1} parent=39 // pred_fallthru
          _
        // Predicated region
        $region49: #{tpu_custom_call.1} parent=39 // pred_check
          %p288 = pneg %p120
        $region50: #{tpu_custom_call.1} parent=39 // pred_check_branch
          %290 = sbr.rel (%p288) target = $region52
        $region51: #{tpu_custom_call.1} parent=39 // pred_region
          %291 = dma.done [#allocation5], 256
        $region52: #{tpu_custom_call.1} parent=39 // pred_fallthru
          _
        %s292 = sand.u32 %s44, 1
        %s293 = scalar_lea.sflag [#allocation3], %s292
        %s294 = sand.u32 %s44, 1
        %s295 = smul.addr %s294, 4
        %s296 = scalar_lea.vmem [#allocation2], %s295
        %p297 = pneg %p57
        %p298 = pneg %p54
        %p299 = pneg %p78
        %p300 = pneg %p75
        %p301 = pneg %p99
        %p302 = pneg %p96
        %p303 = pneg %p120
        %p304 = pneg %p117
        %p305 = pneg %p141
        %p306 = pneg %p138
        %p307 = pneg %p169
        %p308 = pneg %p166
        %s309 = sand.u32 %s156, 1
        %s310 = sand.u32 %s156, 1
        %s311 = smul.addr %s310, 16
        %s312 = scalar_lea.vmem [#allocation7], %s311
        %p313 = pneg %p197
        %p314 = pneg %p194
        %s315 = sand.u32 %s184, 1
        %s316 = sand.u32 %s184, 1
        %s317 = smul.addr %s316, 16
        %s318 = scalar_lea.vmem [#allocation8], %s317
        %v320 = vld [vmem:[%s279] sm:$0xf]
        %v321 = vld [vmem:[#allocation4] sm:$0xf]
        %v322 = vld [vmem:[#allocation4 + $0x4] sm:$0xf]
        %v323 = vld [vmem:[#allocation4 + $0x8] sm:$0xf]
        %v324 = vld [vmem:[#allocation4 + $0xc] sm:$0xf]
        %v325 = vld [vmem:[%s2] sm:$0x1]
        %v327 = vlaneseq
        %v328 = vshrl.u32 %v327, 7
        %v329 = vsub.s32 0, %v328
        %v330 = vrot.slane %v325, %v329
        %v336 = vunpack.c.l.b16 %v321
        %v337 = vunpack.c.l.b16 %v322
        %v338 = vunpack.c.l.b16 %v323
        %v339 = vunpack.c.l.b16 %v324
        %v340 = vpack.c.b16 %v337, %v336
        %v341 = vpack.c.b16 %v339, %v338
        %vm344 = vcmask 261120
        %v346 = vsel %vm344, %v320, 0
        %348 = vmatprep.subr.bf16.mxu0 0
        %349 = vmatpush1.bf16.msra.mxu0 0
        %350 = vmatprep.subr.bf16.mxu0 0
        %351 = vmatpush1.bf16.msra.mxu0 0
        %352 = vmatprep.subr.bf16.mxu0 0
        %353 = vmatpush1.bf16.msra.mxu0 0
        %354 = vmatprep.subr.bf16.mxu0 0
        %355 = vmatpush1.bf16.msra.mxu0 0
        %356 = vmatprep.subr.bf16.mxu0 0
        %357 = vmatpush1.bf16.msra.mxu0 0
        %358 = vmatprep.subr.bf16.mxu0 0
        %359 = vmatpush1.bf16.msra.mxu0 0
        %360 = vmatprep.subr.bf16.mxu0 0
        %361 = vmatpush1.bf16.msra.mxu0 %v341
        %362 = vmatprep.subr.bf16.mxu0 0
        %363 = vmatpush1.bf16.msra.mxu0 %v340
        %364 = vmatprep.subr.bf16.mxu0 0
        %365 = vmatpush2.bf16.msra.mxu0 0
        %366 = vmatprep.subr.bf16.mxu0 0
        %367 = vmatpush2.bf16.msra.mxu0 0
        %368 = vmatprep.subr.bf16.mxu0 0
        %369 = vmatpush2.bf16.msra.mxu0 0
        %370 = vmatprep.subr.bf16.mxu0 0
        %371 = vmatpush2.bf16.msra.mxu0 0
        %372 = vmatprep.subr.bf16.mxu0 0
        %373 = vmatpush2.bf16.msra.mxu0 0
        %374 = vmatprep.subr.bf16.mxu0 0
        %375 = vmatpush2.bf16.msra.mxu0 0
        %376 = vmatprep.subr.bf16.mxu0 0
        %377 = vmatpush2.bf16.msra.mxu0 0
        %378 = vmatprep.subr.bf16.mxu0 0
        %379 = vmatpush2.bf16.msra.mxu0 0
        %380 = vmatprep.mubr.bf16.mxu0 0
        %381 = vmatmul.mubr.bf16.gmra.mxu0 %v346
        %v382 = vpop.f32.mrf.mxu0
        %v383 = vadd.f32 %v330, %v382
        %v384 = vpop.f32.mrf.mxu0
        %v385 = vpop.f32.mrf.mxu0
        %v386 = vpop.f32.mrf.mxu0
        %387 = vdwg.mxu0
        %v388 = vpack.c.bf16 %v383, %v383
        %vm389 = vcmask 60416
        %390 = vst.msk [vmem:[%s312] sm:$0xf] %vm389, %v388
        %v392 = vunpack.c.l.b16 %v388
        %v393 = vpack.c.b16 %v392, %v392
        %394 = vrot.lane.b32.xlu0 %v393, 120
        %v395 = vpop.permute.xlu0 %394
        %s397 = scalar_lea.vmem %s312, 4 [#allocation7]
        %398 = vst.msk [vmem:[%s397] sm:$0xf] %vm389, %v395
        %399 = vrot.lane.b32.xlu0 %v393, 112
        %v400 = vpop.permute.xlu0 %399
        %s402 = scalar_lea.vmem %s312, 8 [#allocation7]
        %403 = vst.msk [vmem:[%s402] sm:$0xf] %vm389, %v400
        %404 = vrot.lane.b32.xlu0 %v393, 104
        %v405 = vpop.permute.xlu0 %404
        %s407 = scalar_lea.vmem %s312, 12 [#allocation7]
        %408 = vst.msk [vmem:[%s407] sm:$0xf] %vm389, %v405
        %v409 = vld [vmem:[#allocation6] sm:$0xf]
        %v410 = vld [vmem:[#allocation6 + $0x4] sm:$0xf]
        %v411 = vld [vmem:[#allocation6 + $0x8] sm:$0xf]
        %v412 = vld [vmem:[#allocation6 + $0xc] sm:$0xf]
        %v413 = vld [vmem:[%s4] sm:$0x1]
        %v415 = vlaneseq
        %v416 = vshrl.u32 %v415, 7
        %v417 = vsub.s32 0, %v416
        %v418 = vrot.slane %v413, %v417
        %v424 = vunpack.c.l.b16 %v409
        %v425 = vunpack.c.l.b16 %v410
        %v426 = vunpack.c.l.b16 %v411
        %v427 = vunpack.c.l.b16 %v412
        %v428 = vpack.c.b16 %v425, %v424
        %v429 = vpack.c.b16 %v427, %v426
        %432 = vmatprep.subr.bf16.mxu0 0
        %433 = vmatpush1.bf16.msra.mxu0 0
        %434 = vmatprep.subr.bf16.mxu0 0
        %435 = vmatpush1.bf16.msra.mxu0 0
        %436 = vmatprep.subr.bf16.mxu0 0
        %437 = vmatpush1.bf16.msra.mxu0 0
        %438 = vmatprep.subr.bf16.mxu0 0
        %439 = vmatpush1.bf16.msra.mxu0 0
        %440 = vmatprep.subr.bf16.mxu0 0
        %441 = vmatpush1.bf16.msra.mxu0 0
        %442 = vmatprep.subr.bf16.mxu0 0
        %443 = vmatpush1.bf16.msra.mxu0 0
        %444 = vmatprep.subr.bf16.mxu0 0
        %445 = vmatpush1.bf16.msra.mxu0 %v429
        %446 = vmatprep.subr.bf16.mxu0 0
        %447 = vmatpush1.bf16.msra.mxu0 %v428
        %448 = vmatprep.subr.bf16.mxu0 0
        %449 = vmatpush2.bf16.msra.mxu0 0
        %450 = vmatprep.subr.bf16.mxu0 0
        %451 = vmatpush2.bf16.msra.mxu0 0
        %452 = vmatprep.subr.bf16.mxu0 0
        %453 = vmatpush2.bf16.msra.mxu0 0
        %454 = vmatprep.subr.bf16.mxu0 0
        %455 = vmatpush2.bf16.msra.mxu0 0
        %456 = vmatprep.subr.bf16.mxu0 0
        %457 = vmatpush2.bf16.msra.mxu0 0
        %458 = vmatprep.subr.bf16.mxu0 0
        %459 = vmatpush2.bf16.msra.mxu0 0
        %460 = vmatprep.subr.bf16.mxu0 0
        %461 = vmatpush2.bf16.msra.mxu0 0
        %462 = vmatprep.subr.bf16.mxu0 0
        %463 = vmatpush2.bf16.msra.mxu0 0
        %464 = vmatprep.mubr.bf16.mxu0 0
        %465 = vmatmul.mubr.bf16.gmra.mxu0 %v346
        %v466 = vpop.f32.mrf.mxu0
        %v467 = vadd.f32 %v418, %v466
        %v468 = vpop.f32.mrf.mxu0
        %v469 = vpop.f32.mrf.mxu0
        %v470 = vpop.f32.mrf.mxu0
        %471 = vdwg.mxu0
        %v472 = vpack.c.bf16 %v467, %v467
        %473 = vst.msk [vmem:[%s318] sm:$0xf] %vm389, %v472
        %v475 = vunpack.c.l.b16 %v472
        %v476 = vpack.c.b16 %v475, %v475
        %477 = vrot.lane.b32.xlu0 %v476, 120
        %v478 = vpop.permute.xlu0 %477
        %s480 = scalar_lea.vmem %s318, 4 [#allocation8]
        %481 = vst.msk [vmem:[%s480] sm:$0xf] %vm389, %v478
        %482 = vrot.lane.b32.xlu0 %v476, 112
        %v483 = vpop.permute.xlu0 %482
        %s485 = scalar_lea.vmem %s318, 8 [#allocation8]
        %486 = vst.msk [vmem:[%s485] sm:$0xf] %vm389, %v483
        %487 = vrot.lane.b32.xlu0 %v476, 104
        %v488 = vpop.permute.xlu0 %487
        %s490 = scalar_lea.vmem %s318, 12 [#allocation8]
        %491 = vst.msk [vmem:[%s490] sm:$0xf] %vm389, %v488
        %s492 = sand.u32 %s156, 1
        %s493 = sand.u32 %s156, 1
        %s494 = smul.addr %s493, 16
        %s495 = scalar_lea.vmem [#allocation7], %s494
        %s496 = sand.u32 %s184, 1
        %s497 = sand.u32 %s184, 1
        %s498 = smul.addr %s497, 16
        %s499 = scalar_lea.vmem [#allocation8], %s498
        // Predicated region
        $region53: #{tpu_custom_call.1} parent=39 // pred_check
          %p500 = pneg %p166
        $region54: #{tpu_custom_call.1} parent=39 // pred_check_branch
          %502 = sbr.rel (%p500) target = $region56
        $region55: #{tpu_custom_call.1} parent=39 // pred_region
          %s503 = smul.addr %s26, 8
          %s504 = sadd.s32 %s27, %s503
          %s505 = smul.addr %s504, 4
          %s506 = scalar_lea.vmem %s5, %s505
          // Predicated region
          $region57: #{tpu_custom_call.1} parent=55 // pred_check
            _
          $region58: #{tpu_custom_call.1} parent=55 // pred_check_branch
            %508 = sbr.rel (0) target = $region60
          $region59: #{tpu_custom_call.1} parent=55 // pred_region
            // Predicated region
            $region61: #{tpu_custom_call.1} parent=59 // pred_check
              _
            $region62: #{tpu_custom_call.1} parent=59 // pred_check_branch
              %510 = sbr.rel target = $region64
            $region63: #{tpu_custom_call.1} parent=59 // pred_region
              // Predicated region
              $region76: #{tpu_custom_call.1} parent=63 // pred_check
                _
              $region77: #{tpu_custom_call.1} parent=63 // pred_check_branch
                %532 = sbr.rel (0) target = $region79
              $region78: #{tpu_custom_call.1} parent=63 // pred_region
                loop: start=0, step=1, limit=1
                $region80: #{tpu_custom_call.1} parent=78 // loop_pre_header
                  _
                $region81: #{tpu_custom_call.1} parent=78 // loop_header
                  %s534 = sphi 0, %s538
                  %p535 = scmp.ge.s32.totalorder %s534, 1
                  %s539 = sphi %s495, %s495
                  %s540 = sphi %s506, %s506
                $region82: #{tpu_custom_call.1} parent=78 // loop_header_branch
                  %537 = sbr.rel (%p535) target = $region86
                $region83: #{tpu_custom_call.1} parent=78 // loop_body
                  _
                $region84: #{tpu_custom_call.1} parent=78 // loop_footer
                  %s538 = sadd.s32 1, %s534
                $region85: #{tpu_custom_call.1} parent=78 // loop_footer_branch
                  %533 = sbr.rel target = $region81
                $region86: #{tpu_custom_call.1} parent=78 // loop_exit
                  _
                %s542 = ssub.s32 16, 1
                loop: start=0, step=1, limit=1
                $region87: #{tpu_custom_call.1} parent=78 // loop_pre_header
                  _
                $region88: #{tpu_custom_call.1} parent=78 // loop_header
                  %s544 = sphi 0, %s548
                  %p545 = scmp.ge.s32.totalorder %s544, 1
                  %s549 = sphi %s495, %s495
                  %s550 = sphi %s506, %s506
                $region89: #{tpu_custom_call.1} parent=78 // loop_header_branch
                  %547 = sbr.rel (%p545) target = $region93
                $region90: #{tpu_custom_call.1} parent=78 // loop_body
                  %v551 = vld [vmem:[%s549] sm:%s542]
                  %552 = vst [vmem:[%s550] sm:%s542] %v551
                  %v553 = vld [vmem:[%s549 + $0x4] sm:%s542]
                  %554 = vst [vmem:[%s550 + $0x8] sm:%s542] %v553
                  %v555 = vld [vmem:[%s549 + $0x8] sm:%s542]
                  %556 = vst [vmem:[%s550 + $0x10] sm:%s542] %v555
                  %v557 = vld [vmem:[%s549 + $0xc] sm:%s542]
                  %558 = vst [vmem:[%s550 + $0x18] sm:%s542] %v557
                $region91: #{tpu_custom_call.1} parent=78 // loop_footer
                  %s548 = sadd.s32 1, %s544
                $region92: #{tpu_custom_call.1} parent=78 // loop_footer_branch
                  %543 = sbr.rel target = $region88
                $region93: #{tpu_custom_call.1} parent=78 // loop_exit
                  _
              $region79: #{tpu_custom_call.1} parent=63 // pred_fallthru
                _
            $region64: #{tpu_custom_call.1} parent=59 // pred_fallthru
              _
            // Predicated region
            $region65: #{tpu_custom_call.1} parent=59 // pred_check
              _
            $region66: #{tpu_custom_call.1} parent=59 // pred_check_branch
              %512 = sbr.rel (0) target = $region68
            $region67: #{tpu_custom_call.1} parent=59 // pred_region
              %s514 = ssub.s32 16, 1
              loop: start=0, step=1, limit=1
              $region69: #{tpu_custom_call.1} parent=67 // loop_pre_header
                _
              $region70: #{tpu_custom_call.1} parent=67 // loop_header
                %s516 = sphi 0, %s520
                %p517 = scmp.ge.s32.totalorder %s516, 1
                %s521 = sphi %s495, %s495
                %s522 = sphi %s506, %s506
              $region71: #{tpu_custom_call.1} parent=67 // loop_header_branch
                %519 = sbr.rel (%p517) target = $region75
              $region72: #{tpu_custom_call.1} parent=67 // loop_body
                %v523 = vld [vmem:[%s521] sm:%s514]
                %524 = vst [vmem:[%s522] sm:%s514] %v523
                %v525 = vld [vmem:[%s521 + $0x4] sm:%s514]
                %526 = vst [vmem:[%s522 + $0x8] sm:%s514] %v525
                %v527 = vld [vmem:[%s521 + $0x8] sm:%s514]
                %528 = vst [vmem:[%s522 + $0x10] sm:%s514] %v527
                %v529 = vld [vmem:[%s521 + $0xc] sm:%s514]
                %530 = vst [vmem:[%s522 + $0x18] sm:%s514] %v529
              $region73: #{tpu_custom_call.1} parent=67 // loop_footer
                %s520 = sadd.s32 1, %s516
              $region74: #{tpu_custom_call.1} parent=67 // loop_footer_branch
                %515 = sbr.rel target = $region70
              $region75: #{tpu_custom_call.1} parent=67 // loop_exit
                _
            $region68: #{tpu_custom_call.1} parent=59 // pred_fallthru
              _
          $region60: #{tpu_custom_call.1} parent=55 // pred_fallthru
            _
          %559 = vnop
        $region56: #{tpu_custom_call.1} parent=39 // pred_fallthru
          _
        // Predicated region
        $region94: #{tpu_custom_call.1} parent=39 // pred_check
          %p560 = pneg %p194
        $region95: #{tpu_custom_call.1} parent=39 // pred_check_branch
          %562 = sbr.rel (%p560) target = $region97
        $region96: #{tpu_custom_call.1} parent=39 // pred_region
          %s563 = smul.addr %s26, 8
          %s564 = sadd.s32 %s27, %s563
          %s565 = smul.addr %s564, 4
          %s566 = scalar_lea.vmem %s6, %s565
          // Predicated region
          $region98: #{tpu_custom_call.1} parent=96 // pred_check
            _
          $region99: #{tpu_custom_call.1} parent=96 // pred_check_branch
            %568 = sbr.rel (0) target = $region101
          $region100: #{tpu_custom_call.1} parent=96 // pred_region
            // Predicated region
            $region102: #{tpu_custom_call.1} parent=100 // pred_check
              _
            $region103: #{tpu_custom_call.1} parent=100 // pred_check_branch
              %570 = sbr.rel target = $region105
            $region104: #{tpu_custom_call.1} parent=100 // pred_region
              // Predicated region
              $region117: #{tpu_custom_call.1} parent=104 // pred_check
                _
              $region118: #{tpu_custom_call.1} parent=104 // pred_check_branch
                %592 = sbr.rel (0) target = $region120
              $region119: #{tpu_custom_call.1} parent=104 // pred_region
                loop: start=0, step=1, limit=1
                $region121: #{tpu_custom_call.1} parent=119 // loop_pre_header
                  _
                $region122: #{tpu_custom_call.1} parent=119 // loop_header
                  %s594 = sphi 0, %s598
                  %p595 = scmp.ge.s32.totalorder %s594, 1
                  %s599 = sphi %s499, %s499
                  %s600 = sphi %s566, %s566
                $region123: #{tpu_custom_call.1} parent=119 // loop_header_branch
                  %597 = sbr.rel (%p595) target = $region127
                $region124: #{tpu_custom_call.1} parent=119 // loop_body
                  _
                $region125: #{tpu_custom_call.1} parent=119 // loop_footer
                  %s598 = sadd.s32 1, %s594
                $region126: #{tpu_custom_call.1} parent=119 // loop_footer_branch
                  %593 = sbr.rel target = $region122
                $region127: #{tpu_custom_call.1} parent=119 // loop_exit
                  _
                %s602 = ssub.s32 16, 1
                loop: start=0, step=1, limit=1
                $region128: #{tpu_custom_call.1} parent=119 // loop_pre_header
                  _
                $region129: #{tpu_custom_call.1} parent=119 // loop_header
                  %s604 = sphi 0, %s608
                  %p605 = scmp.ge.s32.totalorder %s604, 1
                  %s609 = sphi %s499, %s499
                  %s610 = sphi %s566, %s566
                $region130: #{tpu_custom_call.1} parent=119 // loop_header_branch
                  %607 = sbr.rel (%p605) target = $region134
                $region131: #{tpu_custom_call.1} parent=119 // loop_body
                  %v611 = vld [vmem:[%s609] sm:%s602]
                  %612 = vst [vmem:[%s610] sm:%s602] %v611
                  %v613 = vld [vmem:[%s609 + $0x4] sm:%s602]
                  %614 = vst [vmem:[%s610 + $0x8] sm:%s602] %v613
                  %v615 = vld [vmem:[%s609 + $0x8] sm:%s602]
                  %616 = vst [vmem:[%s610 + $0x10] sm:%s602] %v615
                  %v617 = vld [vmem:[%s609 + $0xc] sm:%s602]
                  %618 = vst [vmem:[%s610 + $0x18] sm:%s602] %v617
                $region132: #{tpu_custom_call.1} parent=119 // loop_footer
                  %s608 = sadd.s32 1, %s604
                $region133: #{tpu_custom_call.1} parent=119 // loop_footer_branch
                  %603 = sbr.rel target = $region129
                $region134: #{tpu_custom_call.1} parent=119 // loop_exit
                  _
              $region120: #{tpu_custom_call.1} parent=104 // pred_fallthru
                _
            $region105: #{tpu_custom_call.1} parent=100 // pred_fallthru
              _
            // Predicated region
            $region106: #{tpu_custom_call.1} parent=100 // pred_check
              _
            $region107: #{tpu_custom_call.1} parent=100 // pred_check_branch
              %572 = sbr.rel (0) target = $region109
            $region108: #{tpu_custom_call.1} parent=100 // pred_region
              %s574 = ssub.s32 16, 1
              loop: start=0, step=1, limit=1
              $region110: #{tpu_custom_call.1} parent=108 // loop_pre_header
                _
              $region111: #{tpu_custom_call.1} parent=108 // loop_header
                %s576 = sphi 0, %s580
                %p577 = scmp.ge.s32.totalorder %s576, 1
                %s581 = sphi %s499, %s499
                %s582 = sphi %s566, %s566
              $region112: #{tpu_custom_call.1} parent=108 // loop_header_branch
                %579 = sbr.rel (%p577) target = $region116
              $region113: #{tpu_custom_call.1} parent=108 // loop_body
                %v583 = vld [vmem:[%s581] sm:%s574]
                %584 = vst [vmem:[%s582] sm:%s574] %v583
                %v585 = vld [vmem:[%s581 + $0x4] sm:%s574]
                %586 = vst [vmem:[%s582 + $0x8] sm:%s574] %v585
                %v587 = vld [vmem:[%s581 + $0x8] sm:%s574]
                %588 = vst [vmem:[%s582 + $0x10] sm:%s574] %v587
                %v589 = vld [vmem:[%s581 + $0xc] sm:%s574]
                %590 = vst [vmem:[%s582 + $0x18] sm:%s574] %v589
              $region114: #{tpu_custom_call.1} parent=108 // loop_footer
                %s580 = sadd.s32 1, %s576
              $region115: #{tpu_custom_call.1} parent=108 // loop_footer_branch
                %575 = sbr.rel target = $region111
              $region116: #{tpu_custom_call.1} parent=108 // loop_exit
                _
            $region109: #{tpu_custom_call.1} parent=100 // pred_fallthru
              _
          $region101: #{tpu_custom_call.1} parent=96 // pred_fallthru
            _
          %619 = vnop
        $region97: #{tpu_custom_call.1} parent=39 // pred_fallthru
          _
      $region40: #{tpu_custom_call.1} parent=5 // pred_fallthru
        _
      %p620 = scmp.le.s32.totalorder 2, %s17
      // Predicated region
      $region135: #{tpu_custom_call.1} parent=5 // pred_check
        %p621 = pneg %p620
      $region136: #{tpu_custom_call.1} parent=5 // pred_check_branch
        %623 = sbr.rel (%p621) target = $region138
      $region137: #{tpu_custom_call.1} parent=5 // pred_region
        %s624 = ssub.s32 %s17, 2
        // Predicated region
        $region139: #{tpu_custom_call.1} parent=137 // pred_check
          %p625 = pneg %p172
        $region140: #{tpu_custom_call.1} parent=137 // pred_check_branch
          %627 = sbr.rel (%p625) target = $region142
        $region141: #{tpu_custom_call.1} parent=137 // pred_region
          %s628 = sand.u32 %s157, 1
          %s629 = sand.u32 %s157, 1
          %s630 = smul.addr %s629, 16
          %s631 = scalar_lea.vmem [#allocation7], %s630
        $region142: #{tpu_custom_call.1} parent=137 // pred_fallthru
          _
        // Predicated region
        $region143: #{tpu_custom_call.1} parent=137 // pred_check
          %p632 = pneg %p200
        $region144: #{tpu_custom_call.1} parent=137 // pred_check_branch
          %634 = sbr.rel (%p632) target = $region146
        $region145: #{tpu_custom_call.1} parent=137 // pred_region
          %s635 = sand.u32 %s185, 1
          %s636 = sand.u32 %s185, 1
          %s637 = smul.addr %s636, 16
          %s638 = scalar_lea.vmem [#allocation8], %s637
        $region146: #{tpu_custom_call.1} parent=137 // pred_fallthru
          _
      $region138: #{tpu_custom_call.1} parent=5 // pred_fallthru
        _
    $region6: #{tpu_custom_call.1} parent=1 // loop_footer
      %s21 = sadd.s32 1, %s17
    $region7: #{tpu_custom_call.1} parent=1 // loop_footer_branch
      %16 = sbr.rel target = $region3
    $region8: #{tpu_custom_call.1} parent=1 // loop_exit
      _
    %639 = vsyncpa [#allocation3], 1
    %s640 = scalar_lea.sflag [#allocation3], 1
    %641 = vsyncpa %s640, 1
    %642 = vsyncpa [#allocation5], 1

</llo_original>
